<compile_context>
chip_gen: v7x
topology: tpu7x:2x2x1
jax: 0.10.0
libtpu: 0.0.40
codegen_flags: <defaults>
</compile_context>

<pallas_src>
import functools

import jax
import jax.numpy as jnp
from jax.experimental import pallas as pl
from jax.experimental.pallas import tpu as pltpu

LN_EPS = 1e-5  # torch.nn.LayerNorm default


def _hidden_block(h, w, b, gamma, beta, matmul_dtype):
    # Linear on the MXU; operands optionally bf16, accumulation always f32.
    h = jnp.dot(h.astype(matmul_dtype), w.astype(matmul_dtype),
                preferred_element_type=jnp.float32) + b
    # LayerNorm over the last dim (torch semantics, biased variance, eps=1e-5).
    # Two *independent* row reductions: var = E[h^2] - E[h]^2.
    mean = jnp.mean(h, axis=-1, keepdims=True)
    mean_sq = jnp.mean(h * h, axis=-1, keepdims=True)
    var = mean_sq - mean * mean
    h = (h - mean) * jax.lax.rsqrt(var + LN_EPS)
    h = h * gamma + beta
    # hidden_activation = ReLU (f32)
    return jnp.maximum(h, 0.0)


def dropout_mlp_kernel(x_ref,
                       w1_ref, b1_ref, g1_ref, be1_ref,
                       w2_ref, b2_ref, g2_ref, be2_ref,
                       w3_ref, b3_ref,
                       o_ref, *, matmul_dtype):
    h = x_ref[...]
    h = _hidden_block(h, w1_ref[...], b1_ref[...], g1_ref[...], be1_ref[...],
                      matmul_dtype)
    h = _hidden_block(h, w2_ref[...], b2_ref[...], g2_ref[...], be2_ref[...],
                      matmul_dtype)
    # last_fc_layer (no activation)
    o_ref[...] = jnp.dot(h.astype(matmul_dtype), w3_ref[...].astype(matmul_dtype),
                         preferred_element_type=jnp.float32) + b3_ref[...]


@functools.partial(jax.jit,
                   static_argnames=("output_size", "tile_b", "use_bf16"))
def dropout_mlp_forward(x, params, output_size, tile_b=128, use_bf16=False):
    (w1, b1, g1, be1, w2, b2, g2, be2, w3, b3) = params
    batch, in_features = x.shape
    matmul_dtype = jnp.bfloat16 if use_bf16 else jnp.float32

    # Pad the batch so the grid tiles evenly; padded (zero) rows are harmless
    # through Linear/LN/ReLU and are sliced off below.
    num_tiles = pl.cdiv(batch, tile_b)
    padded = num_tiles * tile_b
    if padded != batch:
        x = jnp.pad(x, ((0, padded - batch), (0, 0)))

    def resident(arr):
        # Constant index map: fetched once, stays resident in VMEM across the
        # whole batch grid.
        return pl.BlockSpec(arr.shape, lambda i: (0, 0))

    kernel = functools.partial(dropout_mlp_kernel, matmul_dtype=matmul_dtype)
    out = pl.pallas_call(
        kernel,
        out_shape=jax.ShapeDtypeStruct((padded, output_size), jnp.float32),
        grid=(num_tiles,),
        in_specs=[
            pl.BlockSpec((tile_b, in_features), lambda i: (i, 0)),
            resident(w1), resident(b1), resident(g1), resident(be1),
            resident(w2), resident(b2), resident(g2), resident(be2),
            resident(w3), resident(b3),
        ],
        out_specs=pl.BlockSpec((tile_b, output_size), lambda i: (i, 0)),
        compiler_params=pltpu.CompilerParams(
            # Batch tiles are independent -> shard across v7x's 2 TensorCores.
            dimension_semantics=("parallel",),
            # Explicit budget sized for v7x (64 MiB physical / 32 MiB scoped).
            vmem_limit_bytes=32 * 1024 * 1024,
        ),
    )(x, w1, b1, g1, be1, w2, b2, g2, be2, w3, b3)
    return out[:batch]


def xavier_uniform(key, fan_in, fan_out, gain=1.0):
    # torch.nn.init.xavier_uniform_ on a (out, in) weight; built directly in
    # (in, out) layout (transpose of the torch tensor) for x @ W.
    bound = gain * (6.0 / (fan_in + fan_out)) ** 0.5
    return jax.random.uniform(key, (fan_in, fan_out), jnp.float32,
                              minval=-bound, maxval=bound)


def init_params(key, input_size, hidden_sizes, output_size):
    k1, k2, k3 = jax.random.split(key, 3)
    h1, h2 = hidden_sizes
    # Linear layers: xavier_uniform weight, zero bias (dropout_weights_init_)
    w1 = xavier_uniform(k1, input_size, h1)
    b1 = jnp.zeros((1, h1), jnp.float32)
    w2 = xavier_uniform(k2, h1, h2)
    b2 = jnp.zeros((1, h2), jnp.float32)
    w3 = xavier_uniform(k3, h2, output_size)
    b3 = jnp.zeros((1, output_size), jnp.float32)
    # LayerNorm defaults: weight=1, bias=0
    g1 = jnp.ones((1, h1), jnp.float32)
    be1 = jnp.zeros((1, h1), jnp.float32)
    g2 = jnp.ones((1, h2), jnp.float32)
    be2 = jnp.zeros((1, h2), jnp.float32)
    return (w1, b1, g1, be1, w2, b2, g2, be2, w3, b3)


def reference_forward(x, params):
    (w1, b1, g1, be1, w2, b2, g2, be2, w3, b3) = params

    def block(h, w, b, g, be):
        h = h @ w + b
        mean = h.mean(-1, keepdims=True)
        var = ((h - mean) ** 2).mean(-1, keepdims=True)
        h = (h - mean) / jnp.sqrt(var + LN_EPS)
        return jnp.maximum(h * g + be, 0.0)

    h = block(x, w1, b1, g1, be1)
    h = block(h, w2, b2, g2, be2)
    return h @ w3 + b3


if __name__ == "__main__":
    input_size, hidden_sizes, output_size = 16, (32, 32), 8
    batch = 200  # deliberately not a multiple of the tile to exercise padding
    tile_b = 64

    key = jax.random.PRNGKey(0)
    k_param, k_x = jax.random.split(key)
    params = init_params(k_param, input_size, hidden_sizes, output_size)
    x = jax.random.normal(k_x, (batch, input_size), jnp.float32)

    ref = reference_forward(x, params)

    # f32 path (exact match with the PyTorch-style reference).
    out = dropout_mlp_forward(x, params, output_size, tile_b=tile_b,
                              use_bf16=False)
    out = jax.block_until_ready(out)
    assert out.shape == (batch, output_size)
    assert jnp.allclose(out, ref, atol=1e-5, rtol=1e-5), "f32 mismatch vs ref"

    # bf16-matmul path (v6e/v7x MXU; accumulation + LN/ReLU stay in f32).
    out_bf16 = dropout_mlp_forward(x, params, output_size, tile_b=tile_b,
                                   use_bf16=True)
    out_bf16 = jax.block_until_ready(out_bf16)
    assert out_bf16.shape == (batch, output_size)
    assert jnp.all(jnp.isfinite(out_bf16))
    assert jnp.allclose(out_bf16, ref, atol=1e-1, rtol=1e-1), \
        "bf16 path diverged from ref beyond bf16 tolerance"

    print("KERNEL_OK")
</pallas_src>

<mosaic_0001>
module attributes {stable_mosaic.version = 11 : i64} {
  func.func @dropout_mlp_kernel(%arg0: i32, %arg1: memref<64x16xf32, #tpu.memory_space<vmem>>, %arg2: memref<16x32xf32, #tpu.memory_space<vmem>>, %arg3: memref<1x32xf32, #tpu.memory_space<vmem>>, %arg4: memref<1x32xf32, #tpu.memory_space<vmem>>, %arg5: memref<1x32xf32, #tpu.memory_space<vmem>>, %arg6: memref<32x32xf32, #tpu.memory_space<vmem>>, %arg7: memref<1x32xf32, #tpu.memory_space<vmem>>, %arg8: memref<1x32xf32, #tpu.memory_space<vmem>>, %arg9: memref<1x32xf32, #tpu.memory_space<vmem>>, %arg10: memref<32x8xf32, #tpu.memory_space<vmem>>, %arg11: memref<1x8xf32, #tpu.memory_space<vmem>>, %arg12: memref<64x8xf32, #tpu.memory_space<vmem>>) attributes {dimension_semantics = [#tpu.dimension_semantics<parallel>], iteration_bounds = array<i64: 4>, scalar_prefetch = 0 : i64, scratch_operands = 0 : i64, tpu.core_type = #tpu.core_type<tc>, window_params = [{transform_indices = @transform_0, window_bounds = array<i64: 64, 16>}, {pipeline_mode = #tpu.pipeline_mode<synchronous>, transform_indices = @transform_1, window_bounds = array<i64: 16, 32>}, {pipeline_mode = #tpu.pipeline_mode<synchronous>, transform_indices = @transform_2, window_bounds = array<i64: 1, 32>}, {pipeline_mode = #tpu.pipeline_mode<synchronous>, transform_indices = @transform_3, window_bounds = array<i64: 1, 32>}, {pipeline_mode = #tpu.pipeline_mode<synchronous>, transform_indices = @transform_4, window_bounds = array<i64: 1, 32>}, {pipeline_mode = #tpu.pipeline_mode<synchronous>, transform_indices = @transform_5, window_bounds = array<i64: 32, 32>}, {pipeline_mode = #tpu.pipeline_mode<synchronous>, transform_indices = @transform_6, window_bounds = array<i64: 1, 32>}, {pipeline_mode = #tpu.pipeline_mode<synchronous>, transform_indices = @transform_7, window_bounds = array<i64: 1, 32>}, {pipeline_mode = #tpu.pipeline_mode<synchronous>, transform_indices = @transform_8, window_bounds = array<i64: 1, 32>}, {pipeline_mode = #tpu.pipeline_mode<synchronous>, transform_indices = @transform_9, window_bounds = array<i64: 32, 8>}, {pipeline_mode = #tpu.pipeline_mode<synchronous>, transform_indices = @transform_10, window_bounds = array<i64: 1, 8>}, {transform_indices = @transform_11, window_bounds = array<i64: 64, 8>}]} {
    %c0 = arith.constant 0 : index
    %c0_0 = arith.constant 0 : index
    %0 = vector.load %arg1[%c0, %c0_0] : memref<64x16xf32, #tpu.memory_space<vmem>>, vector<64x16xf32>
    %c0_1 = arith.constant 0 : index
    %c0_2 = arith.constant 0 : index
    %1 = vector.load %arg2[%c0_1, %c0_2] : memref<16x32xf32, #tpu.memory_space<vmem>>, vector<16x32xf32>
    %c0_3 = arith.constant 0 : index
    %c0_4 = arith.constant 0 : index
    %2 = vector.load %arg3[%c0_3, %c0_4] : memref<1x32xf32, #tpu.memory_space<vmem>>, vector<1x32xf32>
    %c0_5 = arith.constant 0 : index
    %c0_6 = arith.constant 0 : index
    %3 = vector.load %arg4[%c0_5, %c0_6] : memref<1x32xf32, #tpu.memory_space<vmem>>, vector<1x32xf32>
    %c0_7 = arith.constant 0 : index
    %c0_8 = arith.constant 0 : index
    %4 = vector.load %arg5[%c0_7, %c0_8] : memref<1x32xf32, #tpu.memory_space<vmem>>, vector<1x32xf32>
    %cst = arith.constant dense<0.000000e+00> : vector<64x32xf32>
    %5 = tpu.matmul %0, %1, %cst {dimension_numbers = #tpu.dot_dimension_numbers<[1], [0], [0], [1], [0, 0, 1, 1], [], []>} : vector<64x16xf32>, vector<16x32xf32>, vector<64x32xf32> -> vector<64x32xf32>
    %6 = vector.broadcast %2 : vector<1x32xf32> to vector<64x32xf32>
    %7 = arith.addf %5, %6 : vector<64x32xf32>
    %cst_9 = arith.constant dense<0.000000e+00> : vector<64xf32>
    %8 = vector.multi_reduction <add>, %7, %cst_9 [1] : vector<64x32xf32> to vector<64xf32>
    %9 = vector.shape_cast %8 : vector<64xf32> to vector<64x1xf32>
    %cst_10 = arith.constant 3.200000e+01 : f32
    %10 = vector.broadcast %cst_10 : f32 to vector<64x1xf32>
    %11 = arith.divf %9, %10 : vector<64x1xf32>
    %12 = arith.mulf %7, %7 : vector<64x32xf32>
    %cst_11 = arith.constant dense<0.000000e+00> : vector<64xf32>
    %13 = vector.multi_reduction <add>, %12, %cst_11 [1] : vector<64x32xf32> to vector<64xf32>
    %14 = vector.shape_cast %13 : vector<64xf32> to vector<64x1xf32>
    %cst_12 = arith.constant 3.200000e+01 : f32
    %15 = vector.broadcast %cst_12 : f32 to vector<64x1xf32>
    %16 = arith.divf %14, %15 : vector<64x1xf32>
    %17 = arith.mulf %11, %11 : vector<64x1xf32>
    %18 = arith.subf %16, %17 : vector<64x1xf32>
    %19 = vector.broadcast %11 : vector<64x1xf32> to vector<64x32xf32>
    %20 = arith.subf %7, %19 : vector<64x32xf32>
    %cst_13 = arith.constant 9.99999974E-6 : f32
    %21 = vector.broadcast %cst_13 : f32 to vector<64x1xf32>
    %22 = arith.addf %18, %21 : vector<64x1xf32>
    %23 = math.rsqrt %22 : vector<64x1xf32>
    %24 = vector.broadcast %23 : vector<64x1xf32> to vector<64x32xf32>
    %25 = arith.mulf %20, %24 : vector<64x32xf32>
    %26 = vector.broadcast %3 : vector<1x32xf32> to vector<64x32xf32>
    %27 = arith.mulf %25, %26 : vector<64x32xf32>
    %28 = vector.broadcast %4 : vector<1x32xf32> to vector<64x32xf32>
    %29 = arith.addf %27, %28 : vector<64x32xf32>
    %cst_14 = arith.constant 0.000000e+00 : f32
    %30 = vector.broadcast %cst_14 : f32 to vector<64x32xf32>
    %31 = arith.maximumf %29, %30 : vector<64x32xf32>
    %c0_15 = arith.constant 0 : index
    %c0_16 = arith.constant 0 : index
    %32 = vector.load %arg6[%c0_15, %c0_16] : memref<32x32xf32, #tpu.memory_space<vmem>>, vector<32x32xf32>
    %c0_17 = arith.constant 0 : index
    %c0_18 = arith.constant 0 : index
    %33 = vector.load %arg7[%c0_17, %c0_18] : memref<1x32xf32, #tpu.memory_space<vmem>>, vector<1x32xf32>
    %c0_19 = arith.constant 0 : index
    %c0_20 = arith.constant 0 : index
    %34 = vector.load %arg8[%c0_19, %c0_20] : memref<1x32xf32, #tpu.memory_space<vmem>>, vector<1x32xf32>
    %c0_21 = arith.constant 0 : index
    %c0_22 = arith.constant 0 : index
    %35 = vector.load %arg9[%c0_21, %c0_22] : memref<1x32xf32, #tpu.memory_space<vmem>>, vector<1x32xf32>
    %cst_23 = arith.constant dense<0.000000e+00> : vector<64x32xf32>
    %36 = tpu.matmul %31, %32, %cst_23 {dimension_numbers = #tpu.dot_dimension_numbers<[1], [0], [0], [1], [0, 0, 1, 1], [], []>} : vector<64x32xf32>, vector<32x32xf32>, vector<64x32xf32> -> vector<64x32xf32>
    %37 = vector.broadcast %33 : vector<1x32xf32> to vector<64x32xf32>
    %38 = arith.addf %36, %37 : vector<64x32xf32>
    %cst_24 = arith.constant dense<0.000000e+00> : vector<64xf32>
    %39 = vector.multi_reduction <add>, %38, %cst_24 [1] : vector<64x32xf32> to vector<64xf32>
    %40 = vector.shape_cast %39 : vector<64xf32> to vector<64x1xf32>
    %cst_25 = arith.constant 3.200000e+01 : f32
    %41 = vector.broadcast %cst_25 : f32 to vector<64x1xf32>
    %42 = arith.divf %40, %41 : vector<64x1xf32>
    %43 = arith.mulf %38, %38 : vector<64x32xf32>
    %cst_26 = arith.constant dense<0.000000e+00> : vector<64xf32>
    %44 = vector.multi_reduction <add>, %43, %cst_26 [1] : vector<64x32xf32> to vector<64xf32>
    %45 = vector.shape_cast %44 : vector<64xf32> to vector<64x1xf32>
    %cst_27 = arith.constant 3.200000e+01 : f32
    %46 = vector.broadcast %cst_27 : f32 to vector<64x1xf32>
    %47 = arith.divf %45, %46 : vector<64x1xf32>
    %48 = arith.mulf %42, %42 : vector<64x1xf32>
    %49 = arith.subf %47, %48 : vector<64x1xf32>
    %50 = vector.broadcast %42 : vector<64x1xf32> to vector<64x32xf32>
    %51 = arith.subf %38, %50 : vector<64x32xf32>
    %cst_28 = arith.constant 9.99999974E-6 : f32
    %52 = vector.broadcast %cst_28 : f32 to vector<64x1xf32>
    %53 = arith.addf %49, %52 : vector<64x1xf32>
    %54 = math.rsqrt %53 : vector<64x1xf32>
    %55 = vector.broadcast %54 : vector<64x1xf32> to vector<64x32xf32>
    %56 = arith.mulf %51, %55 : vector<64x32xf32>
    %57 = vector.broadcast %34 : vector<1x32xf32> to vector<64x32xf32>
    %58 = arith.mulf %56, %57 : vector<64x32xf32>
    %59 = vector.broadcast %35 : vector<1x32xf32> to vector<64x32xf32>
    %60 = arith.addf %58, %59 : vector<64x32xf32>
    %cst_29 = arith.constant 0.000000e+00 : f32
    %61 = vector.broadcast %cst_29 : f32 to vector<64x32xf32>
    %62 = arith.maximumf %60, %61 : vector<64x32xf32>
    %c0_30 = arith.constant 0 : index
    %c0_31 = arith.constant 0 : index
    %63 = vector.load %arg10[%c0_30, %c0_31] : memref<32x8xf32, #tpu.memory_space<vmem>>, vector<32x8xf32>
    %cst_32 = arith.constant dense<0.000000e+00> : vector<64x8xf32>
    %64 = tpu.matmul %62, %63, %cst_32 {dimension_numbers = #tpu.dot_dimension_numbers<[1], [0], [0], [1], [0, 0, 1, 1], [], []>} : vector<64x32xf32>, vector<32x8xf32>, vector<64x8xf32> -> vector<64x8xf32>
    %c0_33 = arith.constant 0 : index
    %c0_34 = arith.constant 0 : index
    %65 = vector.load %arg11[%c0_33, %c0_34] : memref<1x8xf32, #tpu.memory_space<vmem>>, vector<1x8xf32>
    %66 = vector.broadcast %65 : vector<1x8xf32> to vector<64x8xf32>
    %67 = arith.addf %64, %66 : vector<64x8xf32>
    %c0_35 = arith.constant 0 : index
    %c0_36 = arith.constant 0 : index
    %68 = vector.load %arg12[%c0_35, %c0_36] : memref<64x8xf32, #tpu.memory_space<vmem>>, vector<64x8xf32>
    tpu.vector_store %arg12[%c0_35, %c0_36], %67 {strides = array<i32>} : memref<64x8xf32, #tpu.memory_space<vmem>>, vector<64x8xf32>,
    return
  }
  func.func @transform_0(%arg0: i32) -> (i32, i32) {
    %c0_i32 = arith.constant 0 : i32
    %c0_i32_0 = arith.constant 0 : i32
    return %arg0, %c0_i32 : i32, i32
  }
  func.func @transform_1(%arg0: i32) -> (i32, i32) {
    %c0_i32 = arith.constant 0 : i32
    %c0_i32_0 = arith.constant 0 : i32
    %c0_i32_1 = arith.constant 0 : i32
    return %c0_i32, %c0_i32_0 : i32, i32
  }
  func.func @transform_2(%arg0: i32) -> (i32, i32) {
    %c0_i32 = arith.constant 0 : i32
    %c0_i32_0 = arith.constant 0 : i32
    %c0_i32_1 = arith.constant 0 : i32
    return %c0_i32, %c0_i32_0 : i32, i32
  }
  func.func @transform_3(%arg0: i32) -> (i32, i32) {
    %c0_i32 = arith.constant 0 : i32
    %c0_i32_0 = arith.constant 0 : i32
    %c0_i32_1 = arith.constant 0 : i32
    return %c0_i32, %c0_i32_0 : i32, i32
  }
  func.func @transform_4(%arg0: i32) -> (i32, i32) {
    %c0_i32 = arith.constant 0 : i32
    %c0_i32_0 = arith.constant 0 : i32
    %c0_i32_1 = arith.constant 0 : i32
    return %c0_i32, %c0_i32_0 : i32, i32
  }
  func.func @transform_5(%arg0: i32) -> (i32, i32) {
    %c0_i32 = arith.constant 0 : i32
    %c0_i32_0 = arith.constant 0 : i32
    %c0_i32_1 = arith.constant 0 : i32
    return %c0_i32, %c0_i32_0 : i32, i32
  }
  func.func @transform_6(%arg0: i32) -> (i32, i32) {
    %c0_i32 = arith.constant 0 : i32
    %c0_i32_0 = arith.constant 0 : i32
    %c0_i32_1 = arith.constant 0 : i32
    return %c0_i32, %c0_i32_0 : i32, i32
  }
  func.func @transform_7(%arg0: i32) -> (i32, i32) {
    %c0_i32 = arith.constant 0 : i32
    %c0_i32_0 = arith.constant 0 : i32
    %c0_i32_1 = arith.constant 0 : i32
    return %c0_i32, %c0_i32_0 : i32, i32
  }
  func.func @transform_8(%arg0: i32) -> (i32, i32) {
    %c0_i32 = arith.constant 0 : i32
    %c0_i32_0 = arith.constant 0 : i32
    %c0_i32_1 = arith.constant 0 : i32
    return %c0_i32, %c0_i32_0 : i32, i32
  }
  func.func @transform_9(%arg0: i32) -> (i32, i32) {
    %c0_i32 = arith.constant 0 : i32
    %c0_i32_0 = arith.constant 0 : i32
    %c0_i32_1 = arith.constant 0 : i32
    return %c0_i32, %c0_i32_0 : i32, i32
  }
  func.func @transform_10(%arg0: i32) -> (i32, i32) {
    %c0_i32 = arith.constant 0 : i32
    %c0_i32_0 = arith.constant 0 : i32
    %c0_i32_1 = arith.constant 0 : i32
    return %c0_i32, %c0_i32_0 : i32, i32
  }
  func.func @transform_11(%arg0: i32) -> (i32, i32) {
    %c0_i32 = arith.constant 0 : i32
    %c0_i32_0 = arith.constant 0 : i32
    return %arg0, %c0_i32 : i32, i32
  }
}

</mosaic_0001>

<llo_original>
// kernel: dropout_mlp_forward.1
$region0: #{dropout_mlp_forward.1}
  #allocation0 [shape = 'u32[]', space=smem, size = 0x4, offset = 0x4, fixed_abs, tag = 'smem constant byte address 0x4 - core index']
  #allocation1 [shape = 'u32[144,128]{1,0:T(1,128)}', space=vmem, size = 0x12000, scoped, tag = 'internal scratch']
  %s0 = inlined_call_operand.vmem [shape: f32[256,16], index: 0, kind: input, shape index: {}]
  %s1 = inlined_call_operand.vmem [shape: f32[16,32], index: 1, kind: input, shape index: {}]
  %s2 = inlined_call_operand.vmem [shape: f32[1,32], index: 2, kind: input, shape index: {}]
  %s3 = inlined_call_operand.vmem [shape: f32[1,32], index: 3, kind: input, shape index: {}]
  %s4 = inlined_call_operand.vmem [shape: f32[1,32], index: 4, kind: input, shape index: {}]
  %s5 = inlined_call_operand.vmem [shape: f32[32,32], index: 5, kind: input, shape index: {}]
  %s6 = inlined_call_operand.vmem [shape: f32[1,32], index: 6, kind: input, shape index: {}]
  %s7 = inlined_call_operand.vmem [shape: f32[1,32], index: 7, kind: input, shape index: {}]
  %s8 = inlined_call_operand.vmem [shape: f32[1,32], index: 8, kind: input, shape index: {}]
  %s9 = inlined_call_operand.vmem [shape: f32[32,8], index: 9, kind: input, shape index: {}]
  %s10 = inlined_call_operand.vmem [shape: f32[1,8], index: 10, kind: input, shape index: {}]
  %s11 = inlined_call_operand.vmem [shape: f32[256,8], index: 11, kind: output, shape index: {}]
  %s12 = sld [smem:[#allocation0]]
  $region77: #{dropout_mlp_forward.1} parent=0
    _
  %s14 = ssub.s32 1, %s12
  %s15 = scalar_select 0, %s14, %s12
  loop: start=0, step=1, limit=6
  $region2: #{dropout_mlp_forward.1} parent=0 // loop_pre_header
    _
  $region3: #{dropout_mlp_forward.1} parent=0 // loop_header
    %s17 = sphi 0, %s21
    %p18 = scmp.ge.s32.totalorder %s17, 6
    %s27 = sphi 0, %s29
    %s30 = sphi 0, %s27
    %s31 = sphi 0, %s30
    %s47 = sphi 0, %s31
    %s51 = sphi 0, %s51
    %s53 = sphi 0, %s51
    %s54 = sphi 0, %s53
    %s68 = sphi 0, %s54
    %s72 = sphi 0, %s72
    %s74 = sphi 0, %s72
    %s75 = sphi 0, %s74
    %s89 = sphi 0, %s75
    %s93 = sphi 0, %s93
    %s95 = sphi 0, %s93
    %s96 = sphi 0, %s95
    %s110 = sphi 0, %s96
    %s114 = sphi 0, %s114
    %s116 = sphi 0, %s114
    %s117 = sphi 0, %s116
    %s131 = sphi 0, %s117
    %s135 = sphi 0, %s135
    %s137 = sphi 0, %s135
    %s138 = sphi 0, %s137
    %s152 = sphi 0, %s138
    %s156 = sphi 0, %s156
    %s158 = sphi 0, %s156
    %s159 = sphi 0, %s158
    %s173 = sphi 0, %s159
    %s177 = sphi 0, %s177
    %s179 = sphi 0, %s177
    %s180 = sphi 0, %s179
    %s194 = sphi 0, %s180
    %s198 = sphi 0, %s198
    %s200 = sphi 0, %s198
    %s201 = sphi 0, %s200
    %s215 = sphi 0, %s201
    %s219 = sphi 0, %s219
    %s221 = sphi 0, %s219
    %s222 = sphi 0, %s221
    %s236 = sphi 0, %s222
    %s240 = sphi 0, %s240
    %s242 = sphi 0, %s240
    %s243 = sphi 0, %s242
    %s257 = sphi 0, %s243
    %s263 = sphi 0, %s265
    %s266 = sphi 0, %s263
    %s267 = sphi 0, %s266
    %s283 = sphi 0, %s267
  $region4: #{dropout_mlp_forward.1} parent=0 // loop_header_branch
    %20 = sbr.rel (%p18) target = $region8
  $region5: #{dropout_mlp_forward.1} parent=0 // loop_body
    %s22 = ssub.s32 %s17, 1
    %s23 = ssub.s32 %s17, 2
    %s24 = sadd.s32 %s17, 1
    %s25 = ssub.s32 %s17, %s24
    %p26 = scmp.eq.s32.totalorder %s25, 0
    %s28 = sadd.s32 %s27, 1
    %s29 = scalar_select %p26, %s27, %s28
    %p32 = pneg %p26
    %p33 = scmp.eq.s32.totalorder %s17, 3
    %p34 = por %p32, %p33
    %p35 = scmp.ne.s32.totalorder %s27, %s30
    %p36 = scmp.eq.s32.totalorder %s17, 0
    %p37 = por %p35, %p36
    %p38 = scmp.ne.s32.totalorder %s27, %s30
    %p39 = scmp.eq.s32.totalorder %s22, 3
    %p40 = por %p38, %p39
    %p41 = scmp.ne.s32.totalorder %s30, %s31
    %p42 = scmp.eq.s32.totalorder %s22, 0
    %p43 = por %p41, %p42
    %p44 = scmp.ne.s32.totalorder %s30, %s31
    %p45 = scmp.eq.s32.totalorder %s23, 3
    %p46 = por %p44, %p45
    %p48 = scmp.ne.s32.totalorder %s31, %s47
    %p49 = scmp.eq.s32.totalorder %s23, 0
    %p50 = por %p48, %p49
    %s52 = sadd.s32 %s51, 1
    %p55 = scmp.eq.s32.totalorder %s17, 3
    %p56 = scmp.ne.s32.totalorder %s51, %s53
    %p57 = scmp.eq.s32.totalorder %s17, 0
    %p58 = por %p56, %p57
    %p59 = scmp.ne.s32.totalorder %s51, %s53
    %p60 = scmp.eq.s32.totalorder %s22, 3
    %p61 = por %p59, %p60
    %p62 = scmp.ne.s32.totalorder %s53, %s54
    %p63 = scmp.eq.s32.totalorder %s22, 0
    %p64 = por %p62, %p63
    %p65 = scmp.ne.s32.totalorder %s53, %s54
    %p66 = scmp.eq.s32.totalorder %s23, 3
    %p67 = por %p65, %p66
    %p69 = scmp.ne.s32.totalorder %s54, %s68
    %p70 = scmp.eq.s32.totalorder %s23, 0
    %p71 = por %p69, %p70
    %s73 = sadd.s32 %s72, 1
    %p76 = scmp.eq.s32.totalorder %s17, 3
    %p77 = scmp.ne.s32.totalorder %s72, %s74
    %p78 = scmp.eq.s32.totalorder %s17, 0
    %p79 = por %p77, %p78
    %p80 = scmp.ne.s32.totalorder %s72, %s74
    %p81 = scmp.eq.s32.totalorder %s22, 3
    %p82 = por %p80, %p81
    %p83 = scmp.ne.s32.totalorder %s74, %s75
    %p84 = scmp.eq.s32.totalorder %s22, 0
    %p85 = por %p83, %p84
    %p86 = scmp.ne.s32.totalorder %s74, %s75
    %p87 = scmp.eq.s32.totalorder %s23, 3
    %p88 = por %p86, %p87
    %p90 = scmp.ne.s32.totalorder %s75, %s89
    %p91 = scmp.eq.s32.totalorder %s23, 0
    %p92 = por %p90, %p91
    %s94 = sadd.s32 %s93, 1
    %p97 = scmp.eq.s32.totalorder %s17, 3
    %p98 = scmp.ne.s32.totalorder %s93, %s95
    %p99 = scmp.eq.s32.totalorder %s17, 0
    %p100 = por %p98, %p99
    %p101 = scmp.ne.s32.totalorder %s93, %s95
    %p102 = scmp.eq.s32.totalorder %s22, 3
    %p103 = por %p101, %p102
    %p104 = scmp.ne.s32.totalorder %s95, %s96
    %p105 = scmp.eq.s32.totalorder %s22, 0
    %p106 = por %p104, %p105
    %p107 = scmp.ne.s32.totalorder %s95, %s96
    %p108 = scmp.eq.s32.totalorder %s23, 3
    %p109 = por %p107, %p108
    %p111 = scmp.ne.s32.totalorder %s96, %s110
    %p112 = scmp.eq.s32.totalorder %s23, 0
    %p113 = por %p111, %p112
    %s115 = sadd.s32 %s114, 1
    %p118 = scmp.eq.s32.totalorder %s17, 3
    %p119 = scmp.ne.s32.totalorder %s114, %s116
    %p120 = scmp.eq.s32.totalorder %s17, 0
    %p121 = por %p119, %p120
    %p122 = scmp.ne.s32.totalorder %s114, %s116
    %p123 = scmp.eq.s32.totalorder %s22, 3
    %p124 = por %p122, %p123
    %p125 = scmp.ne.s32.totalorder %s116, %s117
    %p126 = scmp.eq.s32.totalorder %s22, 0
    %p127 = por %p125, %p126
    %p128 = scmp.ne.s32.totalorder %s116, %s117
    %p129 = scmp.eq.s32.totalorder %s23, 3
    %p130 = por %p128, %p129
    %p132 = scmp.ne.s32.totalorder %s117, %s131
    %p133 = scmp.eq.s32.totalorder %s23, 0
    %p134 = por %p132, %p133
    %s136 = sadd.s32 %s135, 1
    %p139 = scmp.eq.s32.totalorder %s17, 3
    %p140 = scmp.ne.s32.totalorder %s135, %s137
    %p141 = scmp.eq.s32.totalorder %s17, 0
    %p142 = por %p140, %p141
    %p143 = scmp.ne.s32.totalorder %s135, %s137
    %p144 = scmp.eq.s32.totalorder %s22, 3
    %p145 = por %p143, %p144
    %p146 = scmp.ne.s32.totalorder %s137, %s138
    %p147 = scmp.eq.s32.totalorder %s22, 0
    %p148 = por %p146, %p147
    %p149 = scmp.ne.s32.totalorder %s137, %s138
    %p150 = scmp.eq.s32.totalorder %s23, 3
    %p151 = por %p149, %p150
    %p153 = scmp.ne.s32.totalorder %s138, %s152
    %p154 = scmp.eq.s32.totalorder %s23, 0
    %p155 = por %p153, %p154
    %s157 = sadd.s32 %s156, 1
    %p160 = scmp.eq.s32.totalorder %s17, 3
    %p161 = scmp.ne.s32.totalorder %s156, %s158
    %p162 = scmp.eq.s32.totalorder %s17, 0
    %p163 = por %p161, %p162
    %p164 = scmp.ne.s32.totalorder %s156, %s158
    %p165 = scmp.eq.s32.totalorder %s22, 3
    %p166 = por %p164, %p165
    %p167 = scmp.ne.s32.totalorder %s158, %s159
    %p168 = scmp.eq.s32.totalorder %s22, 0
    %p169 = por %p167, %p168
    %p170 = scmp.ne.s32.totalorder %s158, %s159
    %p171 = scmp.eq.s32.totalorder %s23, 3
    %p172 = por %p170, %p171
    %p174 = scmp.ne.s32.totalorder %s159, %s173
    %p175 = scmp.eq.s32.totalorder %s23, 0
    %p176 = por %p174, %p175
    %s178 = sadd.s32 %s177, 1
    %p181 = scmp.eq.s32.totalorder %s17, 3
    %p182 = scmp.ne.s32.totalorder %s177, %s179
    %p183 = scmp.eq.s32.totalorder %s17, 0
    %p184 = por %p182, %p183
    %p185 = scmp.ne.s32.totalorder %s177, %s179
    %p186 = scmp.eq.s32.totalorder %s22, 3
    %p187 = por %p185, %p186
    %p188 = scmp.ne.s32.totalorder %s179, %s180
    %p189 = scmp.eq.s32.totalorder %s22, 0
    %p190 = por %p188, %p189
    %p191 = scmp.ne.s32.totalorder %s179, %s180
    %p192 = scmp.eq.s32.totalorder %s23, 3
    %p193 = por %p191, %p192
    %p195 = scmp.ne.s32.totalorder %s180, %s194
    %p196 = scmp.eq.s32.totalorder %s23, 0
    %p197 = por %p195, %p196
    %s199 = sadd.s32 %s198, 1
    %p202 = scmp.eq.s32.totalorder %s17, 3
    %p203 = scmp.ne.s32.totalorder %s198, %s200
    %p204 = scmp.eq.s32.totalorder %s17, 0
    %p205 = por %p203, %p204
    %p206 = scmp.ne.s32.totalorder %s198, %s200
    %p207 = scmp.eq.s32.totalorder %s22, 3
    %p208 = por %p206, %p207
    %p209 = scmp.ne.s32.totalorder %s200, %s201
    %p210 = scmp.eq.s32.totalorder %s22, 0
    %p211 = por %p209, %p210
    %p212 = scmp.ne.s32.totalorder %s200, %s201
    %p213 = scmp.eq.s32.totalorder %s23, 3
    %p214 = por %p212, %p213
    %p216 = scmp.ne.s32.totalorder %s201, %s215
    %p217 = scmp.eq.s32.totalorder %s23, 0
    %p218 = por %p216, %p217
    %s220 = sadd.s32 %s219, 1
    %p223 = scmp.eq.s32.totalorder %s17, 3
    %p224 = scmp.ne.s32.totalorder %s219, %s221
    %p225 = scmp.eq.s32.totalorder %s17, 0
    %p226 = por %p224, %p225
    %p227 = scmp.ne.s32.totalorder %s219, %s221
    %p228 = scmp.eq.s32.totalorder %s22, 3
    %p229 = por %p227, %p228
    %p230 = scmp.ne.s32.totalorder %s221, %s222
    %p231 = scmp.eq.s32.totalorder %s22, 0
    %p232 = por %p230, %p231
    %p233 = scmp.ne.s32.totalorder %s221, %s222
    %p234 = scmp.eq.s32.totalorder %s23, 3
    %p235 = por %p233, %p234
    %p237 = scmp.ne.s32.totalorder %s222, %s236
    %p238 = scmp.eq.s32.totalorder %s23, 0
    %p239 = por %p237, %p238
    %s241 = sadd.s32 %s240, 1
    %p244 = scmp.eq.s32.totalorder %s17, 3
    %p245 = scmp.ne.s32.totalorder %s240, %s242
    %p246 = scmp.eq.s32.totalorder %s17, 0
    %p247 = por %p245, %p246
    %p248 = scmp.ne.s32.totalorder %s240, %s242
    %p249 = scmp.eq.s32.totalorder %s22, 3
    %p250 = por %p248, %p249
    %p251 = scmp.ne.s32.totalorder %s242, %s243
    %p252 = scmp.eq.s32.totalorder %s22, 0
    %p253 = por %p251, %p252
    %p254 = scmp.ne.s32.totalorder %s242, %s243
    %p255 = scmp.eq.s32.totalorder %s23, 3
    %p256 = por %p254, %p255
    %p258 = scmp.ne.s32.totalorder %s243, %s257
    %p259 = scmp.eq.s32.totalorder %s23, 0
    %p260 = por %p258, %p259
    %s261 = ssub.s32 %s17, %s24
    %p262 = scmp.eq.s32.totalorder %s261, 0
    %s264 = sadd.s32 %s263, 1
    %s265 = scalar_select %p262, %s263, %s264
    %p268 = pneg %p262
    %p269 = scmp.eq.s32.totalorder %s17, 3
    %p270 = por %p268, %p269
    %p271 = scmp.ne.s32.totalorder %s263, %s266
    %p272 = scmp.eq.s32.totalorder %s17, 0
    %p273 = por %p271, %p272
    %p274 = scmp.ne.s32.totalorder %s263, %s266
    %p275 = scmp.eq.s32.totalorder %s22, 3
    %p276 = por %p274, %p275
    %p277 = scmp.ne.s32.totalorder %s266, %s267
    %p278 = scmp.eq.s32.totalorder %s22, 0
    %p279 = por %p277, %p278
    %p280 = scmp.ne.s32.totalorder %s266, %s267
    %p281 = scmp.eq.s32.totalorder %s23, 3
    %p282 = por %p280, %p281
    %p284 = scmp.ne.s32.totalorder %s267, %s283
    %p285 = scmp.eq.s32.totalorder %s23, 0
    %p286 = por %p284, %p285
    %p287 = scmp.le.s32.totalorder 1, %s17
    %p288 = scmp.lt.s32.totalorder %s17, 5
    %p289 = pnand %p287, %p288
    %p290 = pneg %p289
    // Predicated region
    $region9: #{dropout_mlp_forward.1} parent=5 // pred_check
      _
    $region10: #{dropout_mlp_forward.1} parent=5 // pred_check_branch
      %292 = sbr.rel (%p289) target = $region12
    $region11: #{dropout_mlp_forward.1} parent=5 // pred_region
      %s293 = ssub.s32 %s17, 1
      // Predicated region
      $region13: #{dropout_mlp_forward.1} parent=11 // pred_check
        %p294 = pneg %p64
      $region14: #{dropout_mlp_forward.1} parent=11 // pred_check_branch
        %296 = sbr.rel (%p294) target = $region16
      $region15: #{dropout_mlp_forward.1} parent=11 // pred_region
        _
      $region16: #{dropout_mlp_forward.1} parent=11 // pred_fallthru
        _
      // Predicated region
      $region17: #{dropout_mlp_forward.1} parent=11 // pred_check
        %p297 = pneg %p85
      $region18: #{dropout_mlp_forward.1} parent=11 // pred_check_branch
        %299 = sbr.rel (%p297) target = $region20
      $region19: #{dropout_mlp_forward.1} parent=11 // pred_region
        _
      $region20: #{dropout_mlp_forward.1} parent=11 // pred_fallthru
        _
      // Predicated region
      $region21: #{dropout_mlp_forward.1} parent=11 // pred_check
        %p300 = pneg %p106
      $region22: #{dropout_mlp_forward.1} parent=11 // pred_check_branch
        %302 = sbr.rel (%p300) target = $region24
      $region23: #{dropout_mlp_forward.1} parent=11 // pred_region
        _
      $region24: #{dropout_mlp_forward.1} parent=11 // pred_fallthru
        _
      // Predicated region
      $region25: #{dropout_mlp_forward.1} parent=11 // pred_check
        %p303 = pneg %p127
      $region26: #{dropout_mlp_forward.1} parent=11 // pred_check_branch
        %305 = sbr.rel (%p303) target = $region28
      $region27: #{dropout_mlp_forward.1} parent=11 // pred_region
        _
      $region28: #{dropout_mlp_forward.1} parent=11 // pred_fallthru
        _
      // Predicated region
      $region29: #{dropout_mlp_forward.1} parent=11 // pred_check
        %p306 = pneg %p148
      $region30: #{dropout_mlp_forward.1} parent=11 // pred_check_branch
        %308 = sbr.rel (%p306) target = $region32
      $region31: #{dropout_mlp_forward.1} parent=11 // pred_region
        _
      $region32: #{dropout_mlp_forward.1} parent=11 // pred_fallthru
        _
      // Predicated region
      $region33: #{dropout_mlp_forward.1} parent=11 // pred_check
        %p309 = pneg %p169
      $region34: #{dropout_mlp_forward.1} parent=11 // pred_check_branch
        %311 = sbr.rel (%p309) target = $region36
      $region35: #{dropout_mlp_forward.1} parent=11 // pred_region
        _
      $region36: #{dropout_mlp_forward.1} parent=11 // pred_fallthru
        _
      // Predicated region
      $region37: #{dropout_mlp_forward.1} parent=11 // pred_check
        %p312 = pneg %p190
      $region38: #{dropout_mlp_forward.1} parent=11 // pred_check_branch
        %314 = sbr.rel (%p312) target = $region40
      $region39: #{dropout_mlp_forward.1} parent=11 // pred_region
        _
      $region40: #{dropout_mlp_forward.1} parent=11 // pred_fallthru
        _
      // Predicated region
      $region41: #{dropout_mlp_forward.1} parent=11 // pred_check
        %p315 = pneg %p211
      $region42: #{dropout_mlp_forward.1} parent=11 // pred_check_branch
        %317 = sbr.rel (%p315) target = $region44
      $region43: #{dropout_mlp_forward.1} parent=11 // pred_region
        _
      $region44: #{dropout_mlp_forward.1} parent=11 // pred_fallthru
        _
      // Predicated region
      $region45: #{dropout_mlp_forward.1} parent=11 // pred_check
        %p318 = pneg %p232
      $region46: #{dropout_mlp_forward.1} parent=11 // pred_check_branch
        %320 = sbr.rel (%p318) target = $region48
      $region47: #{dropout_mlp_forward.1} parent=11 // pred_region
        _
      $region48: #{dropout_mlp_forward.1} parent=11 // pred_fallthru
        _
      // Predicated region
      $region49: #{dropout_mlp_forward.1} parent=11 // pred_check
        %p321 = pneg %p253
      $region50: #{dropout_mlp_forward.1} parent=11 // pred_check_branch
        %323 = sbr.rel (%p321) target = $region52
      $region51: #{dropout_mlp_forward.1} parent=11 // pred_region
        _
      $region52: #{dropout_mlp_forward.1} parent=11 // pred_fallthru
        _
    $region12: #{dropout_mlp_forward.1} parent=5 // pred_fallthru
      _
    %p324 = scmp.lt.s32.totalorder %s17, 4
    // Predicated region
    $region53: #{dropout_mlp_forward.1} parent=5 // pred_check
      %p325 = pneg %p324
    $region54: #{dropout_mlp_forward.1} parent=5 // pred_check_branch
      %327 = sbr.rel (%p325) target = $region56
    $region55: #{dropout_mlp_forward.1} parent=5 // pred_region
      // Predicated region
      $region57: #{dropout_mlp_forward.1} parent=55 // pred_check
        %p328 = pneg %p37
      $region58: #{dropout_mlp_forward.1} parent=55 // pred_check_branch
        %330 = sbr.rel (%p328) target = $region60
      $region59: #{dropout_mlp_forward.1} parent=55 // pred_region
        %s331 = smul.u32 8, %s17
        %p332 = scmp.lt.s32.totalorder %s331, 31
        %s333 = scalar_select %p332, %s331, 31
        %s334 = smul.addr %s333, 8
        %s335 = scalar_lea.vmem %s0, %s334
        %s336 = smul.u32 8, %s17
      $region60: #{dropout_mlp_forward.1} parent=55 // pred_fallthru
        _
    $region56: #{dropout_mlp_forward.1} parent=5 // pred_fallthru
      _
    %p337 = scmp.le.s32.totalorder 1, %s17
    %p338 = scmp.lt.s32.totalorder %s17, 5
    %p339 = pnand %p337, %p338
    %p340 = pneg %p339
    // Predicated region
    $region61: #{dropout_mlp_forward.1} parent=5 // pred_check
      _
    $region62: #{dropout_mlp_forward.1} parent=5 // pred_check_branch
      %342 = sbr.rel (%p339) target = $region64
    $region63: #{dropout_mlp_forward.1} parent=5 // pred_region
      %s343 = ssub.s32 %s17, 1
      %s344 = smul.u32 8, %s22
      %p345 = scmp.lt.s32.totalorder %s344, 31
      %s346 = scalar_select %p345, %s344, 31
      %s347 = smul.addr %s346, 8
      %s348 = scalar_lea.vmem %s0, %s347
      %p349 = pneg %p43
      %p350 = pneg %p40
      %p351 = pneg %p64
      %p352 = pneg %p61
      %p353 = pneg %p85
      %p354 = pneg %p82
      %p355 = pneg %p106
      %p356 = pneg %p103
      %p357 = pneg %p127
      %p358 = pneg %p124
      %p359 = pneg %p148
      %p360 = pneg %p145
      %p361 = pneg %p169
      %p362 = pneg %p166
      %p363 = pneg %p190
      %p364 = pneg %p187
      %p365 = pneg %p211
      %p366 = pneg %p208
      %p367 = pneg %p232
      %p368 = pneg %p229
      %p369 = pneg %p253
      %p370 = pneg %p250
      %p371 = pneg %p279
      %p372 = pneg %p276
      %s373 = smul.u32 8, %s22
      %p374 = scmp.lt.s32.totalorder %s373, 31
      %s375 = scalar_select %p374, %s373, 31
      %s376 = smul.addr %s375, 8
      %s377 = scalar_lea.vmem %s11, %s376
      %s378 = smul.u32 8, %s22
      %p379 = scmp.lt.s32.totalorder %s378, 31
      %s380 = scalar_select %p379, %s378, 31
      %s381 = smul.addr %s380, 8
      %s382 = scalar_lea.vmem %s0, %s381
      %s383 = smul.u32 8, %s22
      %s384 = smul.u32 8, %s22
      %p385 = scmp.lt.s32.totalorder %s384, 31
      %s386 = scalar_select %p385, %s384, 31
      %s387 = smul.addr %s386, 8
      %s388 = scalar_lea.vmem %s11, %s387
      %s389 = smul.u32 8, %s22
      %v390 = vld [vmem:[%s382] sm:$0xff]
      %v391 = vld [vmem:[%s382 + $0x8] sm:$0xff]
      %v392 = vld [vmem:[%s382 + $0x10] sm:$0xff]
      %v393 = vld [vmem:[%s382 + $0x18] sm:$0xff]
      %v394 = vld [vmem:[%s382 + $0x20] sm:$0xff]
      %v395 = vld [vmem:[%s382 + $0x28] sm:$0xff]
      %v396 = vld [vmem:[%s382 + $0x30] sm:$0xff]
      %v397 = vld [vmem:[%s382 + $0x38] sm:$0xff]
      %v398 = vld [vmem:[%s1] sm:$0xff]
      %v399 = vld [vmem:[%s1 + $0x8] sm:$0xff]
      %v400 = vld [vmem:[%s2] sm:$0x1]
      %v401 = vld [vmem:[%s3] sm:$0x1]
      %v402 = vld [vmem:[%s4] sm:$0x1]
      %v404 = vlaneseq
      %v405 = vshrl.u32 %v404, 7
      %v406 = vsub.s32 0, %v405
      %v407 = vrot.slane %v400, %v406
      %vm409 = vcmask 130048
      %v411 = vsel %vm409, %v390, 0
      %v414 = vsel %vm409, %v391, 0
      %v417 = vsel %vm409, %v392, 0
      %v420 = vsel %vm409, %v393, 0
      %v423 = vsel %vm409, %v394, 0
      %v426 = vsel %vm409, %v395, 0
      %v429 = vsel %vm409, %v396, 0
      %v432 = vsel %vm409, %v397, 0
      %434 = vmatprep.subr.mxu0 0.0
      %435 = vmatpush1.msra.mxu0 %v398
      %436 = vmatprep.subr.mxu0 0.0
      %437 = vmatpush1.msra.mxu0 %v399
      %438 = vmatprep.subr.mxu0 0.0
      %439 = vmatpush1.msra.mxu0 0.0
      %440 = vmatprep.subr.mxu0 0.0
      %441 = vmatpush1.msra.mxu0 0.0
      %442 = vmatprep.subr.mxu0 0.0
      %443 = vmatpush1.msra.mxu0 0.0
      %444 = vmatprep.subr.mxu0 0.0
      %445 = vmatpush1.msra.mxu0 0.0
      %446 = vmatprep.subr.mxu0 0.0
      %447 = vmatpush1.msra.mxu0 0.0
      %448 = vmatprep.subr.mxu0 0.0
      %449 = vmatpush1.msra.mxu0 0.0
      %450 = vmatprep.subr.mxu0 0.0
      %451 = vmatpush1.msra.mxu0 0.0
      %452 = vmatprep.subr.mxu0 0.0
      %453 = vmatpush1.msra.mxu0 0.0
      %454 = vmatprep.subr.mxu0 0.0
      %455 = vmatpush1.msra.mxu0 0.0
      %456 = vmatprep.subr.mxu0 0.0
      %457 = vmatpush1.msra.mxu0 0.0
      %458 = vmatprep.subr.mxu0 0.0
      %459 = vmatpush1.msra.mxu0 0.0
      %460 = vmatprep.subr.mxu0 0.0
      %461 = vmatpush1.msra.mxu0 0.0
      %462 = vmatprep.subr.mxu0 0.0
      %463 = vmatpush1.msra.mxu0 0.0
      %464 = vmatprep.subr.mxu0 0.0
      %465 = vmatpush1.msra.mxu0 0.0
      %466 = vmatprep.subr.mxu0 0.0
      %467 = vmatpush1.msra.mxu0 0.0
      %468 = vmatprep.subr.mxu0 0.0
      %469 = vmatpush1.msra.mxu0 0.0
      %470 = vmatprep.subr.mxu0 0.0
      %471 = vmatpush1.msra.mxu0 0.0
      %472 = vmatprep.subr.mxu0 0.0
      %473 = vmatpush1.msra.mxu0 0.0
      %474 = vmatprep.subr.mxu0 0.0
      %475 = vmatpush1.msra.mxu0 0.0
      %476 = vmatprep.subr.mxu0 0.0
      %477 = vmatpush1.msra.mxu0 0.0
      %478 = vmatprep.subr.mxu0 0.0
      %479 = vmatpush1.msra.mxu0 0.0
      %480 = vmatprep.subr.mxu0 0.0
      %481 = vmatpush1.msra.mxu0 0.0
      %482 = vmatprep.subr.mxu0 0.0
      %483 = vmatpush1.msra.mxu0 0.0
      %484 = vmatprep.subr.mxu0 0.0
      %485 = vmatpush1.msra.mxu0 0.0
      %486 = vmatprep.subr.mxu0 0.0
      %487 = vmatpush1.msra.mxu0 0.0
      %488 = vmatprep.subr.mxu0 0.0
      %489 = vmatpush1.msra.mxu0 0.0
      %490 = vmatprep.subr.mxu0 0.0
      %491 = vmatpush1.msra.mxu0 0.0
      %492 = vmatprep.subr.mxu0 0.0
      %493 = vmatpush1.msra.mxu0 0.0
      %494 = vmatprep.subr.mxu0 0.0
      %495 = vmatpush1.msra.mxu0 0.0
      %496 = vmatprep.subr.mxu0 0.0
      %497 = vmatpush1.msra.mxu0 0.0
      %498 = vmatprep.mubr.f32.mxu0 0.0
      %499 = vmatmul.mubr.f32.gmra.mrb[0].mxu0 %v411
      %v500 = vpop.f32.mrb[0].mxu0
      %v501 = vadd.f32 %v407, %v500
      %v502 = vpop.f32.mrb[0].mxu0
      %503 = vmatprep.mubr.f32.mxu0 0.0
      %504 = vmatmul.mubr.f32.gmra.mrb[0].mxu0 %v414
      %v505 = vpop.f32.mrb[0].mxu0
      %v506 = vadd.f32 %v407, %v505
      %v507 = vpop.f32.mrb[0].mxu0
      %508 = vmatprep.mubr.f32.mxu0 0.0
      %509 = vmatmul.mubr.f32.gmra.mrb[0].mxu0 %v417
      %v510 = vpop.f32.mrb[0].mxu0
      %v511 = vadd.f32 %v407, %v510
      %v512 = vpop.f32.mrb[0].mxu0
      %513 = vmatprep.mubr.f32.mxu0 0.0
      %514 = vmatmul.mubr.f32.gmra.mrb[0].mxu0 %v420
      %v515 = vpop.f32.mrb[0].mxu0
      %v516 = vadd.f32 %v407, %v515
      %v517 = vpop.f32.mrb[0].mxu0
      %518 = vmatprep.mubr.f32.mxu0 0.0
      %519 = vmatmul.mubr.f32.gmra.mrb[0].mxu0 %v423
      %v520 = vpop.f32.mrb[0].mxu0
      %v521 = vadd.f32 %v407, %v520
      %v522 = vpop.f32.mrb[0].mxu0
      %523 = vmatprep.mubr.f32.mxu0 0.0
      %524 = vmatmul.mubr.f32.gmra.mrb[0].mxu0 %v426
      %v525 = vpop.f32.mrb[0].mxu0
      %v526 = vadd.f32 %v407, %v525
      %v527 = vpop.f32.mrb[0].mxu0
      %528 = vmatprep.mubr.f32.mxu0 0.0
      %529 = vmatmul.mubr.f32.gmra.mrb[0].mxu0 %v429
      %v530 = vpop.f32.mrb[0].mxu0
      %v531 = vadd.f32 %v407, %v530
      %v532 = vpop.f32.mrb[0].mxu0
      %533 = vmatprep.mubr.f32.mxu0 0.0
      %534 = vmatmul.mubr.f32.gmra.mrb[0].mxu0 %v432
      %v535 = vpop.f32.mrb[0].mxu0
      %v536 = vadd.f32 %v407, %v535
      %v537 = vpop.f32.mrb[0].mxu0
      %538 = vdwg.mxu0
      %vm539 = vcmask 261120
      %v540 = vsel %vm539, %v501, 0.0
      %541 = vadd.xlane.f32.xlu0 %v540
      %v542 = vpop.xlane.xlu0 %541
      %v543 = vsel %vm539, %v506, 0.0
      %544 = vadd.xlane.f32.xlu0 %v543
      %v545 = vpop.xlane.xlu0 %544
      %v546 = vsel %vm539, %v511, 0.0
      %547 = vadd.xlane.f32.xlu0 %v546
      %v548 = vpop.xlane.xlu0 %547
      %v549 = vsel %vm539, %v516, 0.0
      %550 = vadd.xlane.f32.xlu0 %v549
      %v551 = vpop.xlane.xlu0 %550
      %v552 = vsel %vm539, %v521, 0.0
      %553 = vadd.xlane.f32.xlu0 %v552
      %v554 = vpop.xlane.xlu0 %553
      %v555 = vsel %vm539, %v526, 0.0
      %556 = vadd.xlane.f32.xlu0 %v555
      %v557 = vpop.xlane.xlu0 %556
      %v558 = vsel %vm539, %v531, 0.0
      %559 = vadd.xlane.f32.xlu0 %v558
      %v560 = vpop.xlane.xlu0 %559
      %v561 = vsel %vm539, %v536, 0.0
      %562 = vadd.xlane.f32.xlu0 %v561
      %v563 = vpop.xlane.xlu0 %562
      %v564 = vrcp.pop 32.0
      %v565 = vmul.f32 %v542, %v564
      %v566 = vmul.f32 %v545, %v564
      %v567 = vmul.f32 %v548, %v564
      %v568 = vmul.f32 %v551, %v564
      %v569 = vmul.f32 %v554, %v564
      %v570 = vmul.f32 %v557, %v564
      %v571 = vmul.f32 %v560, %v564
      %v572 = vmul.f32 %v563, %v564
      %v573 = vmul.f32 %v501, %v501
      %v574 = vmul.f32 %v506, %v506
      %v575 = vmul.f32 %v511, %v511
      %v576 = vmul.f32 %v516, %v516
      %v577 = vmul.f32 %v521, %v521
      %v578 = vmul.f32 %v526, %v526
      %v579 = vmul.f32 %v531, %v531
      %v580 = vmul.f32 %v536, %v536
      %v581 = vsel %vm539, %v573, 0.0
      %582 = vadd.xlane.f32.xlu0 %v581
      %v583 = vpop.xlane.xlu0 %582
      %v584 = vsel %vm539, %v574, 0.0
      %585 = vadd.xlane.f32.xlu0 %v584
      %v586 = vpop.xlane.xlu0 %585
      %v587 = vsel %vm539, %v575, 0.0
      %588 = vadd.xlane.f32.xlu0 %v587
      %v589 = vpop.xlane.xlu0 %588
      %v590 = vsel %vm539, %v576, 0.0
      %591 = vadd.xlane.f32.xlu0 %v590
      %v592 = vpop.xlane.xlu0 %591
      %v593 = vsel %vm539, %v577, 0.0
      %594 = vadd.xlane.f32.xlu0 %v593
      %v595 = vpop.xlane.xlu0 %594
      %v596 = vsel %vm539, %v578, 0.0
      %597 = vadd.xlane.f32.xlu0 %v596
      %v598 = vpop.xlane.xlu0 %597
      %v599 = vsel %vm539, %v579, 0.0
      %600 = vadd.xlane.f32.xlu0 %v599
      %v601 = vpop.xlane.xlu0 %600
      %v602 = vsel %vm539, %v580, 0.0
      %603 = vadd.xlane.f32.xlu0 %v602
      %v604 = vpop.xlane.xlu0 %603
      %v605 = vmul.f32 %v583, %v564
      %v606 = vmul.f32 %v586, %v564
      %v607 = vmul.f32 %v589, %v564
      %v608 = vmul.f32 %v592, %v564
      %v609 = vmul.f32 %v595, %v564
      %v610 = vmul.f32 %v598, %v564
      %v611 = vmul.f32 %v601, %v564
      %v612 = vmul.f32 %v604, %v564
      %v613 = vmul.f32 %v565, %v565
      %v614 = vmul.f32 %v566, %v566
      %v615 = vmul.f32 %v567, %v567
      %v616 = vmul.f32 %v568, %v568
      %v617 = vmul.f32 %v569, %v569
      %v618 = vmul.f32 %v570, %v570
      %v619 = vmul.f32 %v571, %v571
      %v620 = vmul.f32 %v572, %v572
      %v621 = vsub.f32 %v605, %v613
      %v622 = vsub.f32 %v606, %v614
      %v623 = vsub.f32 %v607, %v615
      %v624 = vsub.f32 %v608, %v616
      %v625 = vsub.f32 %v609, %v617
      %v626 = vsub.f32 %v610, %v618
      %v627 = vsub.f32 %v611, %v619
      %v628 = vsub.f32 %v612, %v620
      %v629 = vsub.f32 %v501, %v565
      %v630 = vsub.f32 %v506, %v566
      %v631 = vsub.f32 %v511, %v567
      %v632 = vsub.f32 %v516, %v568
      %v633 = vsub.f32 %v521, %v569
      %v634 = vsub.f32 %v526, %v570
      %v635 = vsub.f32 %v531, %v571
      %v636 = vsub.f32 %v536, %v572
      %v637 = vadd.f32 %v621, 1e-05
      %v638 = vadd.f32 %v622, 1e-05
      %v639 = vadd.f32 %v623, 1e-05
      %v640 = vadd.f32 %v624, 1e-05
      %v641 = vadd.f32 %v625, 1e-05
      %v642 = vadd.f32 %v626, 1e-05
      %v643 = vadd.f32 %v627, 1e-05
      %v644 = vadd.f32 %v628, 1e-05
      %v645 = vrsqrt.pop %v637
      %v646 = vrsqrt.pop %v638
      %v647 = vrsqrt.pop %v639
      %v648 = vrsqrt.pop %v640
      %v649 = vrsqrt.pop %v641
      %v650 = vrsqrt.pop %v642
      %v651 = vrsqrt.pop %v643
      %v652 = vrsqrt.pop %v644
      %v653 = vmul.f32 %v629, %v645
      %v654 = vmul.f32 %v630, %v646
      %v655 = vmul.f32 %v631, %v647
      %v656 = vmul.f32 %v632, %v648
      %v657 = vmul.f32 %v633, %v649
      %v658 = vmul.f32 %v634, %v650
      %v659 = vmul.f32 %v635, %v651
      %v660 = vmul.f32 %v636, %v652
      %v662 = vlaneseq
      %v663 = vshrl.u32 %v662, 7
      %v664 = vsub.s32 0, %v663
      %v665 = vrot.slane %v401, %v664
      %v667 = vmul.f32 %v653, %v665
      %v668 = vmul.f32 %v654, %v665
      %v669 = vmul.f32 %v655, %v665
      %v670 = vmul.f32 %v656, %v665
      %v671 = vmul.f32 %v657, %v665
      %v672 = vmul.f32 %v658, %v665
      %v673 = vmul.f32 %v659, %v665
      %v674 = vmul.f32 %v660, %v665
      %v676 = vlaneseq
      %v677 = vshrl.u32 %v676, 7
      %v678 = vsub.s32 0, %v677
      %v679 = vrot.slane %v402, %v678
      %v681 = vadd.f32 %v667, %v679
      %v682 = vadd.f32 %v668, %v679
      %v683 = vadd.f32 %v669, %v679
      %v684 = vadd.f32 %v670, %v679
      %v685 = vadd.f32 %v671, %v679
      %v686 = vadd.f32 %v672, %v679
      %v687 = vadd.f32 %v673, %v679
      %v688 = vadd.f32 %v674, %v679
      %v689 = vmax.f32 %v681, 0.0
      %v690 = vmax.f32 %v682, 0.0
      %v691 = vmax.f32 %v683, 0.0
      %v692 = vmax.f32 %v684, 0.0
      %v693 = vmax.f32 %v685, 0.0
      %v694 = vmax.f32 %v686, 0.0
      %v695 = vmax.f32 %v687, 0.0
      %v696 = vmax.f32 %v688, 0.0
      %v697 = vld [vmem:[%s5] sm:$0xff]
      %v698 = vld [vmem:[%s5 + $0x8] sm:$0xff]
      %v699 = vld [vmem:[%s5 + $0x10] sm:$0xff]
      %v700 = vld [vmem:[%s5 + $0x18] sm:$0xff]
      %v701 = vld [vmem:[%s6] sm:$0x1]
      %v702 = vld [vmem:[%s7] sm:$0x1]
      %v703 = vld [vmem:[%s8] sm:$0x1]
      %v705 = vlaneseq
      %v706 = vshrl.u32 %v705, 7
      %v707 = vsub.s32 0, %v706
      %v708 = vrot.slane %v701, %v707
      %v711 = vsel %vm539, %v689, 0
      %v714 = vsel %vm539, %v690, 0
      %v717 = vsel %vm539, %v691, 0
      %v720 = vsel %vm539, %v692, 0
      %v723 = vsel %vm539, %v693, 0
      %v726 = vsel %vm539, %v694, 0
      %v729 = vsel %vm539, %v695, 0
      %v732 = vsel %vm539, %v696, 0
      %734 = vmatprep.subr.mxu0 0.0
      %735 = vmatpush1.msra.mxu0 %v697
      %736 = vmatprep.subr.mxu0 0.0
      %737 = vmatpush1.msra.mxu0 %v698
      %738 = vmatprep.subr.mxu0 0.0
      %739 = vmatpush1.msra.mxu0 %v699
      %740 = vmatprep.subr.mxu0 0.0
      %741 = vmatpush1.msra.mxu0 %v700
      %742 = vmatprep.subr.mxu0 0.0
      %743 = vmatpush1.msra.mxu0 0.0
      %744 = vmatprep.subr.mxu0 0.0
      %745 = vmatpush1.msra.mxu0 0.0
      %746 = vmatprep.subr.mxu0 0.0
      %747 = vmatpush1.msra.mxu0 0.0
      %748 = vmatprep.subr.mxu0 0.0
      %749 = vmatpush1.msra.mxu0 0.0
      %750 = vmatprep.subr.mxu0 0.0
      %751 = vmatpush1.msra.mxu0 0.0
      %752 = vmatprep.subr.mxu0 0.0
      %753 = vmatpush1.msra.mxu0 0.0
      %754 = vmatprep.subr.mxu0 0.0
      %755 = vmatpush1.msra.mxu0 0.0
      %756 = vmatprep.subr.mxu0 0.0
      %757 = vmatpush1.msra.mxu0 0.0
      %758 = vmatprep.subr.mxu0 0.0
      %759 = vmatpush1.msra.mxu0 0.0
      %760 = vmatprep.subr.mxu0 0.0
      %761 = vmatpush1.msra.mxu0 0.0
      %762 = vmatprep.subr.mxu0 0.0
      %763 = vmatpush1.msra.mxu0 0.0
      %764 = vmatprep.subr.mxu0 0.0
      %765 = vmatpush1.msra.mxu0 0.0
      %766 = vmatprep.subr.mxu0 0.0
      %767 = vmatpush1.msra.mxu0 0.0
      %768 = vmatprep.subr.mxu0 0.0
      %769 = vmatpush1.msra.mxu0 0.0
      %770 = vmatprep.subr.mxu0 0.0
      %771 = vmatpush1.msra.mxu0 0.0
      %772 = vmatprep.subr.mxu0 0.0
      %773 = vmatpush1.msra.mxu0 0.0
      %774 = vmatprep.subr.mxu0 0.0
      %775 = vmatpush1.msra.mxu0 0.0
      %776 = vmatprep.subr.mxu0 0.0
      %777 = vmatpush1.msra.mxu0 0.0
      %778 = vmatprep.subr.mxu0 0.0
      %779 = vmatpush1.msra.mxu0 0.0
      %780 = vmatprep.subr.mxu0 0.0
      %781 = vmatpush1.msra.mxu0 0.0
      %782 = vmatprep.subr.mxu0 0.0
      %783 = vmatpush1.msra.mxu0 0.0
      %784 = vmatprep.subr.mxu0 0.0
      %785 = vmatpush1.msra.mxu0 0.0
      %786 = vmatprep.subr.mxu0 0.0
      %787 = vmatpush1.msra.mxu0 0.0
      %788 = vmatprep.subr.mxu0 0.0
      %789 = vmatpush1.msra.mxu0 0.0
      %790 = vmatprep.subr.mxu0 0.0
      %791 = vmatpush1.msra.mxu0 0.0
      %792 = vmatprep.subr.mxu0 0.0
      %793 = vmatpush1.msra.mxu0 0.0
      %794 = vmatprep.subr.mxu0 0.0
      %795 = vmatpush1.msra.mxu0 0.0
      %796 = vmatprep.subr.mxu0 0.0
      %797 = vmatpush1.msra.mxu0 0.0
      %798 = vmatprep.mubr.f32.mxu0 0.0
      %799 = vmatmul.mubr.f32.gmra.mrb[0].mxu0 %v711
      %v800 = vpop.f32.mrb[0].mxu0
      %v801 = vadd.f32 %v708, %v800
      %v802 = vpop.f32.mrb[0].mxu0
      %803 = vmatprep.mubr.f32.mxu0 0.0
      %804 = vmatmul.mubr.f32.gmra.mrb[0].mxu0 %v714
      %v805 = vpop.f32.mrb[0].mxu0
      %v806 = vadd.f32 %v708, %v805
      %v807 = vpop.f32.mrb[0].mxu0
      %808 = vmatprep.mubr.f32.mxu0 0.0
      %809 = vmatmul.mubr.f32.gmra.mrb[0].mxu0 %v717
      %v810 = vpop.f32.mrb[0].mxu0
      %v811 = vadd.f32 %v708, %v810
      %v812 = vpop.f32.mrb[0].mxu0
      %813 = vmatprep.mubr.f32.mxu0 0.0
      %814 = vmatmul.mubr.f32.gmra.mrb[0].mxu0 %v720
      %v815 = vpop.f32.mrb[0].mxu0
      %v816 = vadd.f32 %v708, %v815
      %v817 = vpop.f32.mrb[0].mxu0
      %818 = vmatprep.mubr.f32.mxu0 0.0
      %819 = vmatmul.mubr.f32.gmra.mrb[0].mxu0 %v723
      %v820 = vpop.f32.mrb[0].mxu0
      %v821 = vadd.f32 %v708, %v820
      %v822 = vpop.f32.mrb[0].mxu0
      %823 = vmatprep.mubr.f32.mxu0 0.0
      %824 = vmatmul.mubr.f32.gmra.mrb[0].mxu0 %v726
      %v825 = vpop.f32.mrb[0].mxu0
      %v826 = vadd.f32 %v708, %v825
      %v827 = vpop.f32.mrb[0].mxu0
      %828 = vmatprep.mubr.f32.mxu0 0.0
      %829 = vmatmul.mubr.f32.gmra.mrb[0].mxu0 %v729
      %v830 = vpop.f32.mrb[0].mxu0
      %v831 = vadd.f32 %v708, %v830
      %v832 = vpop.f32.mrb[0].mxu0
      %833 = vmatprep.mubr.f32.mxu0 0.0
      %834 = vmatmul.mubr.f32.gmra.mrb[0].mxu0 %v732
      %v835 = vpop.f32.mrb[0].mxu0
      %v836 = vadd.f32 %v708, %v835
      %v837 = vpop.f32.mrb[0].mxu0
      %838 = vdwg.mxu0
      %v839 = vsel %vm539, %v801, 0.0
      %840 = vadd.xlane.f32.xlu0 %v839
      %v841 = vpop.xlane.xlu0 %840
      %v842 = vsel %vm539, %v806, 0.0
      %843 = vadd.xlane.f32.xlu0 %v842
      %v844 = vpop.xlane.xlu0 %843
      %v845 = vsel %vm539, %v811, 0.0
      %846 = vadd.xlane.f32.xlu0 %v845
      %v847 = vpop.xlane.xlu0 %846
      %v848 = vsel %vm539, %v816, 0.0
      %849 = vadd.xlane.f32.xlu0 %v848
      %v850 = vpop.xlane.xlu0 %849
      %v851 = vsel %vm539, %v821, 0.0
      %852 = vadd.xlane.f32.xlu0 %v851
      %v853 = vpop.xlane.xlu0 %852
      %v854 = vsel %vm539, %v826, 0.0
      %855 = vadd.xlane.f32.xlu0 %v854
      %v856 = vpop.xlane.xlu0 %855
      %v857 = vsel %vm539, %v831, 0.0
      %858 = vadd.xlane.f32.xlu0 %v857
      %v859 = vpop.xlane.xlu0 %858
      %v860 = vsel %vm539, %v836, 0.0
      %861 = vadd.xlane.f32.xlu0 %v860
      %v862 = vpop.xlane.xlu0 %861
      %v863 = vmul.f32 %v841, %v564
      %v864 = vmul.f32 %v844, %v564
      %v865 = vmul.f32 %v847, %v564
      %v866 = vmul.f32 %v850, %v564
      %v867 = vmul.f32 %v853, %v564
      %v868 = vmul.f32 %v856, %v564
      %v869 = vmul.f32 %v859, %v564
      %v870 = vmul.f32 %v862, %v564
      %v871 = vmul.f32 %v801, %v801
      %v872 = vmul.f32 %v806, %v806
      %v873 = vmul.f32 %v811, %v811
      %v874 = vmul.f32 %v816, %v816
      %v875 = vmul.f32 %v821, %v821
      %v876 = vmul.f32 %v826, %v826
      %v877 = vmul.f32 %v831, %v831
      %v878 = vmul.f32 %v836, %v836
      %v879 = vsel %vm539, %v871, 0.0
      %880 = vadd.xlane.f32.xlu0 %v879
      %v881 = vpop.xlane.xlu0 %880
      %v882 = vsel %vm539, %v872, 0.0
      %883 = vadd.xlane.f32.xlu0 %v882
      %v884 = vpop.xlane.xlu0 %883
      %v885 = vsel %vm539, %v873, 0.0
      %886 = vadd.xlane.f32.xlu0 %v885
      %v887 = vpop.xlane.xlu0 %886
      %v888 = vsel %vm539, %v874, 0.0
      %889 = vadd.xlane.f32.xlu0 %v888
      %v890 = vpop.xlane.xlu0 %889
      %v891 = vsel %vm539, %v875, 0.0
      %892 = vadd.xlane.f32.xlu0 %v891
      %v893 = vpop.xlane.xlu0 %892
      %v894 = vsel %vm539, %v876, 0.0
      %895 = vadd.xlane.f32.xlu0 %v894
      %v896 = vpop.xlane.xlu0 %895
      %v897 = vsel %vm539, %v877, 0.0
      %898 = vadd.xlane.f32.xlu0 %v897
      %v899 = vpop.xlane.xlu0 %898
      %v900 = vsel %vm539, %v878, 0.0
      %901 = vadd.xlane.f32.xlu0 %v900
      %v902 = vpop.xlane.xlu0 %901
      %v903 = vmul.f32 %v881, %v564
      %v904 = vmul.f32 %v884, %v564
      %v905 = vmul.f32 %v887, %v564
      %v906 = vmul.f32 %v890, %v564
      %v907 = vmul.f32 %v893, %v564
      %v908 = vmul.f32 %v896, %v564
      %v909 = vmul.f32 %v899, %v564
      %v910 = vmul.f32 %v902, %v564
      %v911 = vmul.f32 %v863, %v863
      %v912 = vmul.f32 %v864, %v864
      %v913 = vmul.f32 %v865, %v865
      %v914 = vmul.f32 %v866, %v866
      %v915 = vmul.f32 %v867, %v867
      %v916 = vmul.f32 %v868, %v868
      %v917 = vmul.f32 %v869, %v869
      %v918 = vmul.f32 %v870, %v870
      %v919 = vsub.f32 %v903, %v911
      %v920 = vsub.f32 %v904, %v912
      %v921 = vsub.f32 %v905, %v913
      %v922 = vsub.f32 %v906, %v914
      %v923 = vsub.f32 %v907, %v915
      %v924 = vsub.f32 %v908, %v916
      %v925 = vsub.f32 %v909, %v917
      %v926 = vsub.f32 %v910, %v918
      %v927 = vsub.f32 %v801, %v863
      %v928 = vsub.f32 %v806, %v864
      %v929 = vsub.f32 %v811, %v865
      %v930 = vsub.f32 %v816, %v866
      %v931 = vsub.f32 %v821, %v867
      %v932 = vsub.f32 %v826, %v868
      %v933 = vsub.f32 %v831, %v869
      %v934 = vsub.f32 %v836, %v870
      %v935 = vadd.f32 %v919, 1e-05
      %v936 = vadd.f32 %v920, 1e-05
      %v937 = vadd.f32 %v921, 1e-05
      %v938 = vadd.f32 %v922, 1e-05
      %v939 = vadd.f32 %v923, 1e-05
      %v940 = vadd.f32 %v924, 1e-05
      %v941 = vadd.f32 %v925, 1e-05
      %v942 = vadd.f32 %v926, 1e-05
      %v943 = vrsqrt.pop %v935
      %v944 = vrsqrt.pop %v936
      %v945 = vrsqrt.pop %v937
      %v946 = vrsqrt.pop %v938
      %v947 = vrsqrt.pop %v939
      %v948 = vrsqrt.pop %v940
      %v949 = vrsqrt.pop %v941
      %v950 = vrsqrt.pop %v942
      %v951 = vmul.f32 %v927, %v943
      %v952 = vmul.f32 %v928, %v944
      %v953 = vmul.f32 %v929, %v945
      %v954 = vmul.f32 %v930, %v946
      %v955 = vmul.f32 %v931, %v947
      %v956 = vmul.f32 %v932, %v948
      %v957 = vmul.f32 %v933, %v949
      %v958 = vmul.f32 %v934, %v950
      %v960 = vlaneseq
      %v961 = vshrl.u32 %v960, 7
      %v962 = vsub.s32 0, %v961
      %v963 = vrot.slane %v702, %v962
      %v965 = vmul.f32 %v951, %v963
      %v966 = vmul.f32 %v952, %v963
      %v967 = vmul.f32 %v953, %v963
      %v968 = vmul.f32 %v954, %v963
      %v969 = vmul.f32 %v955, %v963
      %v970 = vmul.f32 %v956, %v963
      %v971 = vmul.f32 %v957, %v963
      %v972 = vmul.f32 %v958, %v963
      %v974 = vlaneseq
      %v975 = vshrl.u32 %v974, 7
      %v976 = vsub.s32 0, %v975
      %v977 = vrot.slane %v703, %v976
      %v979 = vadd.f32 %v965, %v977
      %v980 = vadd.f32 %v966, %v977
      %v981 = vadd.f32 %v967, %v977
      %v982 = vadd.f32 %v968, %v977
      %v983 = vadd.f32 %v969, %v977
      %v984 = vadd.f32 %v970, %v977
      %v985 = vadd.f32 %v971, %v977
      %v986 = vadd.f32 %v972, %v977
      %v987 = vmax.f32 %v979, 0.0
      %v988 = vmax.f32 %v980, 0.0
      %v989 = vmax.f32 %v981, 0.0
      %v990 = vmax.f32 %v982, 0.0
      %v991 = vmax.f32 %v983, 0.0
      %v992 = vmax.f32 %v984, 0.0
      %v993 = vmax.f32 %v985, 0.0
      %v994 = vmax.f32 %v986, 0.0
      %v995 = vld [vmem:[%s9] sm:$0xff]
      %v996 = vld [vmem:[%s9 + $0x8] sm:$0xff]
      %v997 = vld [vmem:[%s9 + $0x10] sm:$0xff]
      %v998 = vld [vmem:[%s9 + $0x18] sm:$0xff]
      %v999 = vld [vmem:[%s10] sm:$0x1]
      %v1001 = vlaneseq
      %v1002 = vshrl.u32 %v1001, 7
      %v1003 = vsub.s32 0, %v1002
      %v1004 = vrot.slane %v999, %v1003
      %v1007 = vsel %vm539, %v987, 0
      %v1010 = vsel %vm539, %v988, 0
      %v1013 = vsel %vm539, %v989, 0
      %v1016 = vsel %vm539, %v990, 0
      %v1019 = vsel %vm539, %v991, 0
      %v1022 = vsel %vm539, %v992, 0
      %v1025 = vsel %vm539, %v993, 0
      %v1028 = vsel %vm539, %v994, 0
      %1030 = vmatprep.subr.mxu0 0.0
      %1031 = vmatpush1.msra.mxu0 %v995
      %1032 = vmatprep.subr.mxu0 0.0
      %1033 = vmatpush1.msra.mxu0 %v996
      %1034 = vmatprep.subr.mxu0 0.0
      %1035 = vmatpush1.msra.mxu0 %v997
      %1036 = vmatprep.subr.mxu0 0.0
      %1037 = vmatpush1.msra.mxu0 %v998
      %1038 = vmatprep.subr.mxu0 0.0
      %1039 = vmatpush1.msra.mxu0 0.0
      %1040 = vmatprep.subr.mxu0 0.0
      %1041 = vmatpush1.msra.mxu0 0.0
      %1042 = vmatprep.subr.mxu0 0.0
      %1043 = vmatpush1.msra.mxu0 0.0
      %1044 = vmatprep.subr.mxu0 0.0
      %1045 = vmatpush1.msra.mxu0 0.0
      %1046 = vmatprep.subr.mxu0 0.0
      %1047 = vmatpush1.msra.mxu0 0.0
      %1048 = vmatprep.subr.mxu0 0.0
      %1049 = vmatpush1.msra.mxu0 0.0
      %1050 = vmatprep.subr.mxu0 0.0
      %1051 = vmatpush1.msra.mxu0 0.0
      %1052 = vmatprep.subr.mxu0 0.0
      %1053 = vmatpush1.msra.mxu0 0.0
      %1054 = vmatprep.subr.mxu0 0.0
      %1055 = vmatpush1.msra.mxu0 0.0
      %1056 = vmatprep.subr.mxu0 0.0
      %1057 = vmatpush1.msra.mxu0 0.0
      %1058 = vmatprep.subr.mxu0 0.0
      %1059 = vmatpush1.msra.mxu0 0.0
      %1060 = vmatprep.subr.mxu0 0.0
      %1061 = vmatpush1.msra.mxu0 0.0
      %1062 = vmatprep.subr.mxu0 0.0
      %1063 = vmatpush1.msra.mxu0 0.0
      %1064 = vmatprep.subr.mxu0 0.0
      %1065 = vmatpush1.msra.mxu0 0.0
      %1066 = vmatprep.subr.mxu0 0.0
      %1067 = vmatpush1.msra.mxu0 0.0
      %1068 = vmatprep.subr.mxu0 0.0
      %1069 = vmatpush1.msra.mxu0 0.0
      %1070 = vmatprep.subr.mxu0 0.0
      %1071 = vmatpush1.msra.mxu0 0.0
      %1072 = vmatprep.subr.mxu0 0.0
      %1073 = vmatpush1.msra.mxu0 0.0
      %1074 = vmatprep.subr.mxu0 0.0
      %1075 = vmatpush1.msra.mxu0 0.0
      %1076 = vmatprep.subr.mxu0 0.0
      %1077 = vmatpush1.msra.mxu0 0.0
      %1078 = vmatprep.subr.mxu0 0.0
      %1079 = vmatpush1.msra.mxu0 0.0
      %1080 = vmatprep.subr.mxu0 0.0
      %1081 = vmatpush1.msra.mxu0 0.0
      %1082 = vmatprep.subr.mxu0 0.0
      %1083 = vmatpush1.msra.mxu0 0.0
      %1084 = vmatprep.subr.mxu0 0.0
      %1085 = vmatpush1.msra.mxu0 0.0
      %1086 = vmatprep.subr.mxu0 0.0
      %1087 = vmatpush1.msra.mxu0 0.0
      %1088 = vmatprep.subr.mxu0 0.0
      %1089 = vmatpush1.msra.mxu0 0.0
      %1090 = vmatprep.subr.mxu0 0.0
      %1091 = vmatpush1.msra.mxu0 0.0
      %1092 = vmatprep.subr.mxu0 0.0
      %1093 = vmatpush1.msra.mxu0 0.0
      %1094 = vmatprep.mubr.f32.mxu0 0.0
      %1095 = vmatmul.mubr.f32.gmra.mrb[0].mxu0 %v1007
      %v1096 = vpop.f32.mrb[0].mxu0
      %v1097 = vadd.f32 %v1004, %v1096
      %v1098 = vpop.f32.mrb[0].mxu0
      %1099 = vmatprep.mubr.f32.mxu0 0.0
      %1100 = vmatmul.mubr.f32.gmra.mrb[0].mxu0 %v1010
      %v1101 = vpop.f32.mrb[0].mxu0
      %v1102 = vadd.f32 %v1004, %v1101
      %v1103 = vpop.f32.mrb[0].mxu0
      %1104 = vmatprep.mubr.f32.mxu0 0.0
      %1105 = vmatmul.mubr.f32.gmra.mrb[0].mxu0 %v1013
      %v1106 = vpop.f32.mrb[0].mxu0
      %v1107 = vadd.f32 %v1004, %v1106
      %v1108 = vpop.f32.mrb[0].mxu0
      %1109 = vmatprep.mubr.f32.mxu0 0.0
      %1110 = vmatmul.mubr.f32.gmra.mrb[0].mxu0 %v1016
      %v1111 = vpop.f32.mrb[0].mxu0
      %v1112 = vadd.f32 %v1004, %v1111
      %v1113 = vpop.f32.mrb[0].mxu0
      %1114 = vmatprep.mubr.f32.mxu0 0.0
      %1115 = vmatmul.mubr.f32.gmra.mrb[0].mxu0 %v1019
      %v1116 = vpop.f32.mrb[0].mxu0
      %v1117 = vadd.f32 %v1004, %v1116
      %v1118 = vpop.f32.mrb[0].mxu0
      %1119 = vmatprep.mubr.f32.mxu0 0.0
      %1120 = vmatmul.mubr.f32.gmra.mrb[0].mxu0 %v1022
      %v1121 = vpop.f32.mrb[0].mxu0
      %v1122 = vadd.f32 %v1004, %v1121
      %v1123 = vpop.f32.mrb[0].mxu0
      %1124 = vmatprep.mubr.f32.mxu0 0.0
      %1125 = vmatmul.mubr.f32.gmra.mrb[0].mxu0 %v1025
      %v1126 = vpop.f32.mrb[0].mxu0
      %v1127 = vadd.f32 %v1004, %v1126
      %v1128 = vpop.f32.mrb[0].mxu0
      %1129 = vmatprep.mubr.f32.mxu0 0.0
      %1130 = vmatmul.mubr.f32.gmra.mrb[0].mxu0 %v1028
      %v1131 = vpop.f32.mrb[0].mxu0
      %v1132 = vadd.f32 %v1004, %v1131
      %v1133 = vpop.f32.mrb[0].mxu0
      %1134 = vdwg.mxu0
      %vm1135 = vcmask 64512
      %1136 = vst.msk [vmem:[%s388] sm:$0xff] %vm1135, %v1097
      %1137 = vst.msk [vmem:[%s388 + $0x8] sm:$0xff] %vm1135, %v1102
      %1138 = vst.msk [vmem:[%s388 + $0x10] sm:$0xff] %vm1135, %v1107
      %1139 = vst.msk [vmem:[%s388 + $0x18] sm:$0xff] %vm1135, %v1112
      %1140 = vst.msk [vmem:[%s388 + $0x20] sm:$0xff] %vm1135, %v1117
      %1141 = vst.msk [vmem:[%s388 + $0x28] sm:$0xff] %vm1135, %v1122
      %1142 = vst.msk [vmem:[%s388 + $0x30] sm:$0xff] %vm1135, %v1127
      %1143 = vst.msk [vmem:[%s388 + $0x38] sm:$0xff] %vm1135, %v1132
      %s1144 = smul.u32 8, %s22
      %p1145 = scmp.lt.s32.totalorder %s1144, 31
      %s1146 = scalar_select %p1145, %s1144, 31
      %s1147 = smul.addr %s1146, 8
      %s1148 = scalar_lea.vmem %s11, %s1147
      // Predicated region
      $region65: #{dropout_mlp_forward.1} parent=63 // pred_check
        %p1149 = pneg %p276
      $region66: #{dropout_mlp_forward.1} parent=63 // pred_check_branch
        %1151 = sbr.rel (%p1149) target = $region68
      $region67: #{dropout_mlp_forward.1} parent=63 // pred_region
        %s1152 = smul.u32 8, %s22
      $region68: #{dropout_mlp_forward.1} parent=63 // pred_fallthru
        _
    $region64: #{dropout_mlp_forward.1} parent=5 // pred_fallthru
      _
    %p1153 = scmp.le.s32.totalorder 2, %s17
    // Predicated region
    $region69: #{dropout_mlp_forward.1} parent=5 // pred_check
      %p1154 = pneg %p1153
    $region70: #{dropout_mlp_forward.1} parent=5 // pred_check_branch
      %1156 = sbr.rel (%p1154) target = $region72
    $region71: #{dropout_mlp_forward.1} parent=5 // pred_region
      %s1157 = ssub.s32 %s17, 2
      // Predicated region
      $region73: #{dropout_mlp_forward.1} parent=71 // pred_check
        %p1158 = pneg %p282
      $region74: #{dropout_mlp_forward.1} parent=71 // pred_check_branch
        %1160 = sbr.rel (%p1158) target = $region76
      $region75: #{dropout_mlp_forward.1} parent=71 // pred_region
        %s1161 = smul.u32 8, %s23
        %p1162 = scmp.lt.s32.totalorder %s1161, 31
        %s1163 = scalar_select %p1162, %s1161, 31
        %s1164 = smul.addr %s1163, 8
        %s1165 = scalar_lea.vmem %s11, %s1164
      $region76: #{dropout_mlp_forward.1} parent=71 // pred_fallthru
        _
    $region72: #{dropout_mlp_forward.1} parent=5 // pred_fallthru
      _
  $region6: #{dropout_mlp_forward.1} parent=0 // loop_footer
    %s21 = sadd.s32 1, %s17
  $region7: #{dropout_mlp_forward.1} parent=0 // loop_footer_branch
    %16 = sbr.rel target = $region3
  $region8: #{dropout_mlp_forward.1} parent=0 // loop_exit
    _

</llo_original>
